<compile_context>
chip_gen: v5e
topology: v5e:2x2
jax: 0.10.0
libtpu: 0.0.40
codegen_flags: <defaults>
</compile_context>

<pallas_src>
import functools
import math
import warnings

import numpy as np
import jax
import jax.numpy as jnp
from jax.experimental import pallas as pl
from jax.experimental.pallas import tpu as pltpu


# ---------------------------------------------------------------------------
# Gaussian taps
# ---------------------------------------------------------------------------
def _gaussian_taps(sigma=1.0):
    """Normalized 1D 3-tap Gaussian [g0, g1, g0]; outer(g, g) equals the
    normalized 3x3 reference kernel, so the blur is computed separably."""
    a = math.exp(-1.0 / (2.0 * sigma * sigma))
    s = 2.0 * a + 1.0
    return a / s, 1.0 / s


# ---------------------------------------------------------------------------
# pltpu.roll convention probe
# ---------------------------------------------------------------------------
_ROLL_FORWARD = None  # True  => pltpu.roll(x, s, ax)[i] == x[i - s]  (jnp.roll)
                      # False => pltpu.roll(x, s, ax)[i] == x[i + s]


def _roll_forward():
    """Probe once, on device, which rotation convention pltpu.roll uses so the
    zero-padding masks in the blur kernel sit on the correct side."""
    global _ROLL_FORWARD
    if _ROLL_FORWARD is None:
        def probe(x_ref, o_ref):
            o_ref[...] = pltpu.roll(x_ref[...], 1, 1)

        try:
            with jax.ensure_compile_time_eval():
                x = jnp.broadcast_to(jax.lax.iota(jnp.int32, 128), (8, 128))
                r = pl.pallas_call(
                    probe, out_shape=jax.ShapeDtypeStruct((8, 128), jnp.int32)
                )(x)
                _ROLL_FORWARD = (int(r[0, 0]) == 127)
        except Exception:
            _ROLL_FORWARD = True   # documented jnp.roll convention
    return _ROLL_FORWARD


# ---------------------------------------------------------------------------
# Blur kernel (flat, lane-dense layout)
# ---------------------------------------------------------------------------
def _blur_kernel(x_ref, col_ref, o_ref, *, H, W, HW, g0, g1, roll_forward):
    """Depthwise 3x3 Gaussian blur (zero padding), separable form, on a
    (tile_nc, H*W) block whose image pixels are flattened onto the lane axis.

    Neighbouring rows/columns are +-W / +-1 flat shifts implemented with
    pltpu.roll + a masked select: no concatenates, no block-sized halo temps,
    lane-dense unmasked stores for any W.
    """
    xv = x_ref[...].astype(jnp.float32)   # f32 accumulate (1e-5 tolerance)
    # TODO(synk): bf16 math on v6e/v7x would allow larger tiles if a ~1e-2
    # tolerance were acceptable; kept f32 here.

    k = jax.lax.broadcasted_iota(jnp.int32, (1, HW), 1)   # flat pixel index
    col = col_ref[...]                                     # column j = k % W (precomputed)

    def shifted(src, s, valid):
        # result[k] = src[k - s] where `valid`, else 0   (zero-padded shift)
        amt = (s if roll_forward else -s) % HW
        r = pltpu.roll(src, amt, 1)
        return jnp.where(jnp.broadcast_to(valid, src.shape), r, 0.0)

    c = g1 / g0   # factored taps: 3 vector multiplies per element instead of 4

    # Vertical 3-tap pass: rows of one image are W apart in the flat layout;
    # the masks also stop rows of adjacent images from mixing.
    v = shifted(xv, W, k >= W) + shifted(xv, -W, k < (H - 1) * W) + c * xv
    # Horizontal 3-tap pass: wrap across row ends masked via the column index.
    o = shifted(v, 1, col > 0) + shifted(v, -1, col < W - 1) + c * v

    o_ref[...] = ((g0 * g0) * o).astype(o_ref.dtype)


# ---------------------------------------------------------------------------
# Tiling helpers
# ---------------------------------------------------------------------------
def _vmem_limit_bytes():
    """Generation-aware scoped-VMEM limit (v5e/v6e: 128 MiB physical, v7x:
    64 MiB per TensorCore) with headroom for Mosaic's own scratch."""
    cap = 64 << 20          # conservative default (v7x per-TC size)
    try:
        info = pltpu.get_tpu_info()
        cap = int(getattr(info, "vmem_capacity_bytes", cap) or cap)
    except Exception:
        pass
    return int(min(cap * 3 // 4, 96 << 20))


def _pick_tile_nc(NC, HW, itemsize, vmem_limit_bytes):
    """NC-tile size: ~4-8 MiB blocks (amortize ~0.35us/grid-step overhead),
    budgeted at ~1/12 of the VMEM limit (2x in + 2x out double buffers plus
    in-kernel f32 temps), sublane-aligned (multiple of 8) unless the whole NC
    axis fits one block, and >=2 grid steps when alignment allows so v7x's two
    TensorCores both get work.  No divisor-of-NC requirement: the grid uses
    cdiv and a ragged last block is harmless (no cross-NC dependence)."""
    target = int(min(8 << 20, max(512 << 10, vmem_limit_bytes // 12)))
    per_slice = max(HW * itemsize, 1)
    t = max(1, target // per_slice)
    if t >= NC:
        t = ((NC + 1) // 2 + 7) // 8 * 8 if NC >= 16 else NC
    else:
        t = min(max(8, t // 8 * 8), NC)
    steps = pl.cdiv(NC, t)
    return int(t), int(steps)


# ---------------------------------------------------------------------------
# Wrappers
# ---------------------------------------------------------------------------
def gaussian_blur_3x3(x, sigma=1.0):
    """Depthwise 3x3 Gaussian blur (zero padding) as a Pallas TPU kernel."""
    N, C, H, W = x.shape
    g0, g1 = _gaussian_taps(sigma)
    NC, HW = N * C, H * W

    # Lane-dense layout: each image's pixels flattened onto the lane axis
    # (free view of the contiguous NCHW buffer).
    xf = x.reshape(NC, HW)
    # Column index of every flattened pixel, precomputed on the host so the
    # kernel never needs a vector integer modulo.
    col = jnp.asarray((np.arange(HW) % W).astype(np.int32).reshape(1, HW))

    vmem_limit = _vmem_limit_bytes()
    tile_nc, steps = _pick_tile_nc(NC, HW, x.dtype.itemsize, vmem_limit)

    kern = functools.partial(_blur_kernel, H=H, W=W, HW=HW, g0=g0, g1=g1,
                             roll_forward=_roll_forward())
    out = pl.pallas_call(
        kern,
        out_shape=jax.ShapeDtypeStruct((NC, HW), x.dtype),
        grid=(steps,),
        in_specs=[
            pl.BlockSpec((tile_nc, HW), lambda i: (i, 0)),   # image block
            pl.BlockSpec((1, HW), lambda i: (0, 0)),         # col indices (constant)
        ],
        out_specs=pl.BlockSpec((tile_nc, HW), lambda i: (i, 0)),
        # Blur in place (each output block depends only on its own input block,
        # read-before-write); keeps the identity cond branch copy-free.
        input_output_aliases={0: 0},
        compiler_params=pltpu.CompilerParams(
            dimension_semantics=("parallel",),   # v7x: shard NC-steps over 2 TCs
            vmem_limit_bytes=vmem_limit,
        ),
    )(xf, col)
    return out.reshape(N, C, H, W)


def random_apply_gaussian_blur(x, key, p=0.5, sigma=1.0):
    """RandomApply(GaussianBlur3x3, p) forward pass.

    PyTorch: `if random.random() > p: return x; return self.fn(x)`.
    TODO(synk): the host-side Python RNG draw has no in-graph equivalent; we
    use a traced jax.random draw and hoist the branch with lax.cond so the
    identity path runs no Pallas kernel (with donation + aliasing it is a true
    no-op, not an HBM copy).
    """
    u = jax.random.uniform(key, ())
    return jax.lax.cond(
        u <= p,
        lambda v: gaussian_blur_3x3(v, sigma=sigma),
        lambda v: v,
        x,
    )


if __name__ == "__main__":
    _roll_forward()   # warm the on-device roll-convention probe outside any trace

    key = jax.random.PRNGKey(0)
    k_x, k_flag = jax.random.split(key)

    N, C, H, W = 2, 4, 16, 16
    p, sigma = 0.5, 1.0
    x = jax.random.normal(k_x, (N, C, H, W), dtype=jnp.float32)
    x_np = np.asarray(x)   # snapshot before donation

    fwd = jax.jit(
        lambda xx, kk: random_apply_gaussian_blur(xx, kk, p=p, sigma=sigma),
        donate_argnums=(0,),
    )
    with warnings.catch_warnings():
        warnings.filterwarnings("ignore", message="Some donated buffers")
        y = jax.block_until_ready(fwd(x, k_flag))

    # Reference check (same random decision as the traced wrapper).
    u = float(jax.random.uniform(k_flag, ()))
    if u <= p:
        a = math.exp(-1.0 / (2.0 * sigma * sigma))
        g = np.array([a, 1.0, a], np.float64)
        wk = np.outer(g, g)
        wk = (wk / wk.sum()).astype(np.float32)
        xp = np.pad(x_np.reshape(N * C, H, W), ((0, 0), (1, 1), (1, 1)))
        blur = np.zeros((N * C, H, W), np.float32)
        for ky in range(3):
            for kx in range(3):
                blur += wk[ky, kx] * xp[:, ky:ky + H, kx:kx + W]
        expected = blur.reshape(N, C, H, W)
    else:
        expected = x_np
    np.testing.assert_allclose(np.asarray(y), expected, rtol=1e-5, atol=1e-5)

    print("KERNEL_OK")
</pallas_src>

<mosaic_0001>
module attributes {stable_mosaic.version = 11 : i64} {
  func.func @probe(%arg0: memref<8x128xi32, #tpu.memory_space<vmem>>, %arg1: memref<8x128xi32, #tpu.memory_space<vmem>>) attributes {dimension_semantics = [], scalar_prefetch = 0 : i64, scratch_operands = 0 : i64, tpu.core_type = #tpu.core_type<tc>} {
    %c0 = arith.constant 0 : index
    %c0_0 = arith.constant 0 : index
    %0 = vector.load %arg0[%c0, %c0_0] : memref<8x128xi32, #tpu.memory_space<vmem>>, vector<8x128xi32>
    %c1_i32 = arith.constant 1 : i32
    %1 = tpu.dynamic_rotate %0 by %c1_i32 dim 1 : vector<8x128xi32>, i32 -> vector<8x128xi32>
    %c0_1 = arith.constant 0 : index
    %c0_2 = arith.constant 0 : index
    %2 = vector.load %arg1[%c0_1, %c0_2] : memref<8x128xi32, #tpu.memory_space<vmem>>, vector<8x128xi32>
    tpu.vector_store %arg1[%c0_1, %c0_2], %1 {strides = array<i32>} : memref<8x128xi32, #tpu.memory_space<vmem>>, vector<8x128xi32>,
    return
  }
}

module attributes {stable_mosaic.version = 11 : i64} {
  func.func @_blur_kernel(%arg0: i32, %arg1: memref<8x256xf32, #tpu.memory_space<vmem>>, %arg2: memref<1x256xi32, #tpu.memory_space<vmem>>, %arg3: memref<8x256xf32, #tpu.memory_space<vmem>>) attributes {dimension_semantics = [#tpu.dimension_semantics<parallel>], iteration_bounds = array<i64: 1>, scalar_prefetch = 0 : i64, scratch_operands = 0 : i64, tpu.core_type = #tpu.core_type<tc>, window_params = [{transform_indices = @transform_0, window_bounds = array<i64: 8, 256>}, {pipeline_mode = #tpu.pipeline_mode<synchronous>, transform_indices = @transform_1, window_bounds = array<i64: 1, 256>}, {transform_indices = @transform_2, window_bounds = array<i64: 8, 256>}]} {
    %c0 = arith.constant 0 : index
    %c0_0 = arith.constant 0 : index
    %0 = vector.load %arg1[%c0, %c0_0] : memref<8x256xf32, #tpu.memory_space<vmem>>, vector<8x256xf32>
    %1 = tpu.iota {dimensions = array<i32: 1>} : vector<1x256xi32>
    %c0_1 = arith.constant 0 : index
    %c0_2 = arith.constant 0 : index
    %2 = vector.load %arg2[%c0_1, %c0_2] : memref<1x256xi32, #tpu.memory_space<vmem>>, vector<1x256xi32>
    %c16_i32 = arith.constant 16 : i32
    %3 = vector.broadcast %c16_i32 : i32 to vector<1x256xi32>
    %4 = arith.cmpi sge, %1, %3 : vector<1x256xi32>
    %c16_i32_3 = arith.constant 16 : i32
    %5 = tpu.dynamic_rotate %0 by %c16_i32_3 dim 1 : vector<8x256xf32>, i32 -> vector<8x256xf32>
    %6 = vector.shape_cast %4 : vector<1x256xi1> to vector<1x256xi1>
    %7 = vector.broadcast %6 : vector<1x256xi1> to vector<8x256xi1>
    %cst = arith.constant 0.000000e+00 : f32
    %8 = vector.broadcast %cst : f32 to vector<8x256xf32>
    %9 = arith.select %7, %5, %8 : vector<8x256xi1>, vector<8x256xf32>
    %c240_i32 = arith.constant 240 : i32
    %10 = vector.broadcast %c240_i32 : i32 to vector<1x256xi32>
    %11 = arith.cmpi slt, %1, %10 : vector<1x256xi32>
    %c240_i32_4 = arith.constant 240 : i32
    %12 = tpu.dynamic_rotate %0 by %c240_i32_4 dim 1 : vector<8x256xf32>, i32 -> vector<8x256xf32>
    %13 = vector.shape_cast %11 : vector<1x256xi1> to vector<1x256xi1>
    %14 = vector.broadcast %13 : vector<1x256xi1> to vector<8x256xi1>
    %cst_5 = arith.constant 0.000000e+00 : f32
    %15 = vector.broadcast %cst_5 : f32 to vector<8x256xf32>
    %16 = arith.select %14, %12, %15 : vector<8x256xi1>, vector<8x256xf32>
    %17 = arith.addf %9, %16 : vector<8x256xf32>
    %cst_6 = arith.constant 1.64872122 : f32
    %18 = vector.broadcast %cst_6 : f32 to vector<8x256xf32>
    %19 = arith.mulf %18, %0 : vector<8x256xf32>
    %20 = arith.addf %17, %19 : vector<8x256xf32>
    %c0_i32 = arith.constant 0 : i32
    %21 = vector.broadcast %c0_i32 : i32 to vector<1x256xi32>
    %22 = arith.cmpi sgt, %2, %21 : vector<1x256xi32>
    %c1_i32 = arith.constant 1 : i32
    %23 = tpu.dynamic_rotate %20 by %c1_i32 dim 1 : vector<8x256xf32>, i32 -> vector<8x256xf32>
    %24 = vector.shape_cast %22 : vector<1x256xi1> to vector<1x256xi1>
    %25 = vector.broadcast %24 : vector<1x256xi1> to vector<8x256xi1>
    %cst_7 = arith.constant 0.000000e+00 : f32
    %26 = vector.broadcast %cst_7 : f32 to vector<8x256xf32>
    %27 = arith.select %25, %23, %26 : vector<8x256xi1>, vector<8x256xf32>
    %c15_i32 = arith.constant 15 : i32
    %28 = vector.broadcast %c15_i32 : i32 to vector<1x256xi32>
    %29 = arith.cmpi slt, %2, %28 : vector<1x256xi32>
    %c255_i32 = arith.constant 255 : i32
    %30 = tpu.dynamic_rotate %20 by %c255_i32 dim 1 : vector<8x256xf32>, i32 -> vector<8x256xf32>
    %31 = vector.shape_cast %29 : vector<1x256xi1> to vector<1x256xi1>
    %32 = vector.broadcast %31 : vector<1x256xi1> to vector<8x256xi1>
    %cst_8 = arith.constant 0.000000e+00 : f32
    %33 = vector.broadcast %cst_8 : f32 to vector<8x256xf32>
    %34 = arith.select %32, %30, %33 : vector<8x256xi1>, vector<8x256xf32>
    %35 = arith.addf %27, %34 : vector<8x256xf32>
    %cst_9 = arith.constant 1.64872122 : f32
    %36 = vector.broadcast %cst_9 : f32 to vector<8x256xf32>
    %37 = arith.mulf %36, %20 : vector<8x256xf32>
    %38 = arith.addf %35, %37 : vector<8x256xf32>
    %cst_10 = arith.constant 0.0751136094 : f32
    %39 = vector.broadcast %cst_10 : f32 to vector<8x256xf32>
    %40 = arith.mulf %39, %38 : vector<8x256xf32>
    %c0_11 = arith.constant 0 : index
    %c0_12 = arith.constant 0 : index
    %41 = vector.load %arg3[%c0_11, %c0_12] : memref<8x256xf32, #tpu.memory_space<vmem>>, vector<8x256xf32>
    tpu.vector_store %arg3[%c0_11, %c0_12], %40 {strides = array<i32>} : memref<8x256xf32, #tpu.memory_space<vmem>>, vector<8x256xf32>,
    return
  }
  func.func @transform_0(%arg0: i32) -> (i32, i32) {
    %c0_i32 = arith.constant 0 : i32
    %c0_i32_0 = arith.constant 0 : i32
    return %arg0, %c0_i32 : i32, i32
  }
  func.func @transform_1(%arg0: i32) -> (i32, i32) {
    %c0_i32 = arith.constant 0 : i32
    %c0_i32_0 = arith.constant 0 : i32
    %c0_i32_1 = arith.constant 0 : i32
    return %c0_i32, %c0_i32_0 : i32, i32
  }
  func.func @transform_2(%arg0: i32) -> (i32, i32) {
    %c0_i32 = arith.constant 0 : i32
    %c0_i32_0 = arith.constant 0 : i32
    return %arg0, %c0_i32 : i32, i32
  }
}

</mosaic_0001>

<llo_original>
// kernel: tpu_custom_call.1
$region0: #{tpu_custom_call.1}
  #allocation0 [shape = 'u32[]', space=smem, size = 0x4, offset = 0x4, fixed_abs, tag = 'smem constant byte address 0x4 - core index']
  #allocation1 [shape = 'u32[72,128]{1,0:T(1,128)}', space=vmem, size = 0x9000, scoped, tag = 'internal scratch']
  %s0 = inlined_call_operand.hbm [shape: s32[8,128], index: 0, kind: input, shape index: {}]
  %s1 = inlined_call_operand.hbm [shape: s32[8,128], index: 1, kind: output, shape index: {}]
  %s2 = sld [smem:[#allocation0]]
  $region18: #{tpu_custom_call.1} parent=0
    _
  %s4 = ssub.s32 1, %s2
  %s5 = scalar_select 0, %s4, %s2
  $region1: #{tpu_custom_call.1} parent=0
    #allocation2 [shape = 'u8[4096]{0}', space=vmem, size = 0x1000, scoped, tag = 'input window, operand 0, single buffered']
    #allocation3 [shape = 's32[1]{0}', space=sflag, size = 0x4, scoped, tag = 'scoped memory for tpu_custom_call.1']
    #allocation4 [shape = 's32[1]{0}', space=sflag, size = 0x4, scoped, tag = 'scoped memory for tpu_custom_call.1']
    #allocation5 [shape = 'u8[4096]{0}', space=vmem, size = 0x1000, scoped, tag = 'output window, operand 0, single buffered']
    %6 = vsyncpa [#allocation3], 0
    %7 = vsyncpa [#allocation4], 0
    // Predicated region
    $region2: #{tpu_custom_call.1} parent=1 // pred_check
      _
    $region3: #{tpu_custom_call.1} parent=1 // pred_check_branch
      %9 = sbr.rel (0) target = $region5
    $region4: #{tpu_custom_call.1} parent=1 // pred_region
      %11 = vsyncadd [#allocation3], 0
      %s13 = sshll.u32 %s0, 4
      %s14 = int_to_ptr.hbm [resolvable:$true] %s13
      %s15 = sshll.u32 [#allocation2], 4
      %s16 = int_to_ptr.vmem [resolvable:$true] %s15
      %18 = dma.hbm_to_vmem [thread:$0]  %s14, 128, %s16, [#allocation3]
    $region5: #{tpu_custom_call.1} parent=1 // pred_fallthru
      _
    // Predicated region
    $region6: #{tpu_custom_call.1} parent=1 // pred_check
      _
    $region7: #{tpu_custom_call.1} parent=1 // pred_check_branch
      %20 = sbr.rel (0) target = $region9
    $region8: #{tpu_custom_call.1} parent=1 // pred_region
      %22 = dma.done [#allocation3], 128
    $region9: #{tpu_custom_call.1} parent=1 // pred_fallthru
      _
    %v23 = vld [vmem:[#allocation2] sm:$0xff]
    %24 = vrot.lane.b32.xlu0 %v23, 1
    %v25 = vpop.permute.xlu0 %24
    %26 = vst [vmem:[#allocation5] sm:$0xff] %v25
    // Predicated region
    $region10: #{tpu_custom_call.1} parent=1 // pred_check
      _
    $region11: #{tpu_custom_call.1} parent=1 // pred_check_branch
      %28 = sbr.rel (0) target = $region13
    $region12: #{tpu_custom_call.1} parent=1 // pred_region
      %30 = vsyncadd [#allocation4], 0
      %s32 = sshll.u32 [#allocation5], 4
      %s33 = int_to_ptr.vmem [resolvable:$true] %s32
      %s34 = sshll.u32 %s1, 4
      %s35 = int_to_ptr.hbm [resolvable:$true] %s34
      %37 = dma.vmem_to_hbm [thread:$0]  %s33, 128, %s35, [#allocation4]
    $region13: #{tpu_custom_call.1} parent=1 // pred_fallthru
      _
    // Predicated region
    $region14: #{tpu_custom_call.1} parent=1 // pred_check
      _
    $region15: #{tpu_custom_call.1} parent=1 // pred_check_branch
      %39 = sbr.rel (0) target = $region17
    $region16: #{tpu_custom_call.1} parent=1 // pred_region
      %41 = dma.done [#allocation4], 128
    $region17: #{tpu_custom_call.1} parent=1 // pred_fallthru
      _
    %42 = vsyncpa [#allocation3], 1
    %43 = vsyncpa [#allocation4], 1

// kernel: branch_1_fun.1
$region0: #{branch_1_fun.1}
  #allocation0 [shape = 'u32[]', space=smem, size = 0x4, offset = 0x4, fixed_abs, tag = 'smem constant byte address 0x4 - core index']
  #allocation1 [shape = 'u32[72,128]{1,0:T(1,128)}', space=vmem, size = 0x9000, scoped, tag = 'internal scratch']
  %s0 = inlined_call_operand.vmem [shape: f32[8,256], index: 0, kind: input, shape index: {}, may-alias: {0,2}]
  %s1 = inlined_call_operand.vmem [shape: s32[1,256], index: 1, kind: input, shape index: {}]
  %s2 = inlined_call_operand.vmem [shape: f32[8,256], index: 2, kind: output, shape index: {}, may-alias: {0,2}]
  %s3 = sld [smem:[#allocation0]]
  $region18: #{branch_1_fun.1} parent=0
    _
  %s5 = ssub.s32 1, %s3
  %s6 = scalar_select 0, %s5, %s3
  // Predicated region
  $region2: #{branch_1_fun.1} parent=0 // pred_check
    _
  $region3: #{branch_1_fun.1} parent=0 // pred_check_branch
    %8 = sbr.rel (0) target = $region5
  $region4: #{branch_1_fun.1} parent=0 // pred_region
    _
  $region5: #{branch_1_fun.1} parent=0 // pred_fallthru
    _
  // Predicated region
  $region6: #{branch_1_fun.1} parent=0 // pred_check
    _
  $region7: #{branch_1_fun.1} parent=0 // pred_check_branch
    %10 = sbr.rel (0) target = $region9
  $region8: #{branch_1_fun.1} parent=0 // pred_region
    _
  $region9: #{branch_1_fun.1} parent=0 // pred_fallthru
    _
  %v11 = vld [vmem:[%s0] sm:$0xff]
  %v12 = vld [vmem:[%s0 + $0x8] sm:$0xff]
  %v13 = vlaneseq
  %v14 = vand.u32 %v13, 127
  %v15 = vadd.s32 %v14, 128
  %v16 = vld [vmem:[%s1] sm:$0x3]
  %vm17 = vcmp.ge.s32.totalorder %v14, 16
  %vm18 = vcmp.ge.s32.totalorder %v15, 16
  %19 = vrot.lane.b32.xlu0 %v11, 16
  %v20 = vpop.permute.xlu0 %19
  %21 = vrot.lane.b32.xlu0 %v12, 16
  %v22 = vpop.permute.xlu0 %21
  %vm23 = vcmp.lt.s32.totalorder %v14, 16
  %v24 = vsel %vm23, %v20, %v22
  %v25 = vsel %vm23, %v22, %v20
  %v26 = vsel %vm17, 1, 0
  %v27 = vsel %vm18, 1, 0
  %vm28 = vcmp.eq.s32.totalorder %v26, 1
  %vm29 = vcmp.eq.s32.totalorder %v27, 1
  %v30 = vsel %vm28, %v25, 0.0
  %v31 = vsel %vm29, %v24, 0.0
  %vm32 = vcmp.lt.s32.totalorder %v14, 240
  %vm33 = vcmp.lt.s32.totalorder %v15, 240
  %34 = vrot.lane.b32.xlu0 %v11, 112
  %v35 = vpop.permute.xlu0 %34
  %36 = vrot.lane.b32.xlu0 %v12, 112
  %v37 = vpop.permute.xlu0 %36
  %vm38 = vcmp.lt.s32.totalorder %v14, 112
  %v39 = vsel %vm38, %v35, %v37
  %v40 = vsel %vm38, %v37, %v35
  %v41 = vsel %vm32, 1, 0
  %v42 = vsel %vm33, 1, 0
  %vm43 = vcmp.eq.s32.totalorder %v41, 1
  %vm44 = vcmp.eq.s32.totalorder %v42, 1
  %v45 = vsel %vm43, %v39, 0.0
  %v46 = vsel %vm44, %v40, 0.0
  %v47 = vadd.f32 %v30, %v45
  %v48 = vadd.f32 %v31, %v46
  %v49 = vmul.f32 %v11, 1.6487212
  %v50 = vmul.f32 %v12, 1.6487212
  %v51 = vadd.f32 %v47, %v49
  %v52 = vadd.f32 %v48, %v50
  %vm53 = vcmp.gt.s32.totalorder %v16, 0
  %54 = vrot.lane.b32.xlu0 %v51, 1
  %v55 = vpop.permute.xlu0 %54
  %56 = vrot.lane.b32.xlu0 %v52, 1
  %v57 = vpop.permute.xlu0 %56
  %vm58 = vcmp.lt.s32.totalorder %v14, 1
  %v59 = vsel %vm58, %v55, %v57
  %v60 = vsel %vm58, %v57, %v55
  %v61 = vsel %vm53, 1, 0
  %v62 = vperm.slane %v61, 0
  %v63 = vperm.slane %v61, 1
  %vm64 = vcmp.eq.s32.totalorder %v62, 1
  %vm65 = vcmp.eq.s32.totalorder %v63, 1
  %v66 = vsel %vm64, %v60, 0.0
  %v67 = vsel %vm65, %v59, 0.0
  %vm68 = vcmp.lt.s32.totalorder %v16, 15
  %69 = vrot.lane.b32.xlu0 %v51, 127
  %v70 = vpop.permute.xlu0 %69
  %71 = vrot.lane.b32.xlu0 %v52, 127
  %v72 = vpop.permute.xlu0 %71
  %vm73 = vcmp.lt.s32.totalorder %v14, 127
  %v74 = vsel %vm73, %v70, %v72
  %v75 = vsel %vm73, %v72, %v70
  %v76 = vsel %vm68, 1, 0
  %v77 = vperm.slane %v76, 0
  %v78 = vperm.slane %v76, 1
  %vm79 = vcmp.eq.s32.totalorder %v77, 1
  %vm80 = vcmp.eq.s32.totalorder %v78, 1
  %v81 = vsel %vm79, %v74, 0.0
  %v82 = vsel %vm80, %v75, 0.0
  %v83 = vadd.f32 %v66, %v81
  %v84 = vadd.f32 %v67, %v82
  %v85 = vmul.f32 %v51, 1.6487212
  %v86 = vmul.f32 %v52, 1.6487212
  %v87 = vadd.f32 %v83, %v85
  %v88 = vadd.f32 %v84, %v86
  %v89 = vmul.f32 %v87, 0.07511361
  %v90 = vmul.f32 %v88, 0.07511361
  %91 = vst [vmem:[%s2] sm:$0xff] %v89
  %92 = vst [vmem:[%s2 + $0x8] sm:$0xff] %v90
  // Predicated region
  $region10: #{branch_1_fun.1} parent=0 // pred_check
    _
  $region11: #{branch_1_fun.1} parent=0 // pred_check_branch
    %94 = sbr.rel (0) target = $region13
  $region12: #{branch_1_fun.1} parent=0 // pred_region
    _
  $region13: #{branch_1_fun.1} parent=0 // pred_fallthru
    _
  // Predicated region
  $region14: #{branch_1_fun.1} parent=0 // pred_check
    _
  $region15: #{branch_1_fun.1} parent=0 // pred_check_branch
    %96 = sbr.rel (0) target = $region17
  $region16: #{branch_1_fun.1} parent=0 // pred_region
    _
  $region17: #{branch_1_fun.1} parent=0 // pred_fallthru
    _

</llo_original>
